<compile_context>
chip_gen: v6e
topology: v6e:2x2x1
jax: 0.10.0
libtpu: 0.0.40
codegen_flags: <defaults>
</compile_context>

<pallas_src>
import jax
import jax.numpy as jnp
from jax.experimental import pallas as pl
from jax.experimental.pallas import tpu as pltpu


def _round_up(n, m):
    return ((n + m - 1) // m) * m


def _cartpole_mlp_kernel(x_ref, w1_ref, b1_ref, w2_ref, b2_ref, o_ref):
    # x:  (TB, 4)   f32   (cast to bf16 here, free VPU filler)
    # w1: (4, 64)   bf16
    # b1: (1, 64)   f32
    # w2: (64, 2)   bf16
    # b2: (1, 2)    f32
    # o:  (TB, 2)   f32   (only the real output columns are ever written)
    x = x_ref[...].astype(w1_ref.dtype)
    h = jnp.dot(x, w1_ref[...], preferred_element_type=jnp.float32)      # (TB, 64) f32
    h = jnp.maximum(h + b1_ref[...], 0.0)                                 # bias + ReLU, f32, 64 lanes
    y = jnp.dot(h.astype(w2_ref.dtype), w2_ref[...],                      # bf16 in, f32 acc
                preferred_element_type=jnp.float32)                       # (TB, 2) f32
    o_ref[...] = (y + b2_ref[...]).astype(o_ref.dtype)


def prepare_params(w1, b1, w2, b2, *, mm_dtype=jnp.bfloat16):
    """One-time glue (hoisted out of the hot path): transpose PyTorch nn.Linear
    weights to (in, out), cast matmul operands to bf16, keep biases in f32.
    No lane padding — the kernel works at the natural 4/64/2 widths.

    w1: (64, 4), b1: (64,), w2: (2, 64), b2: (2,)  — PyTorch nn.Linear layout.
    """
    w1 = jnp.asarray(w1, jnp.float32)
    b1 = jnp.asarray(b1, jnp.float32)
    w2 = jnp.asarray(w2, jnp.float32)
    b2 = jnp.asarray(b2, jnp.float32)
    w1_t = w1.T.astype(mm_dtype)          # (4, 64)
    b1_r = b1.reshape(1, -1)              # (1, 64) f32
    w2_t = w2.T.astype(mm_dtype)          # (64, 2)
    b2_r = b2.reshape(1, -1)              # (1, 2)  f32
    return (w1_t, b1_r, w2_t, b2_r)


def cartpole_net_forward(x, params, *, block_b=4096):
    """x: (B, 4) f32. params: output of prepare_params. Returns (B, 2) f32,
    matching relu(x @ w1.T + b1) @ w2.T + b2 (bf16 matmul inputs, f32 accumulate).
    """
    w1_t, b1_r, w2_t, b2_r = params
    B, feat = x.shape
    hidden = w1_t.shape[1]                # 64
    n_out = w2_t.shape[1]                 # 2

    x = jnp.asarray(x, jnp.float32)

    # Batch tile: multiple of 8 sublanes, large enough to amortize the ~0.35us/step
    # pipeline overhead; tb always divides b_pad exactly.
    tb = min(block_b, _round_up(B, 8))
    b_pad = _round_up(B, tb)
    if b_pad != B:
        # Only the ragged tail rows are padded (zeros). Padded rows produce
        # relu(b1) @ w2 + b2 garbage; they are sliced off below — never consume them.
        x = jnp.pad(x, ((0, b_pad - B), (0, 0)))

    grid = (b_pad // tb,)
    flops = 2 * b_pad * (feat * hidden + hidden * n_out)
    bytes_accessed = (
        x.size * x.dtype.itemsize
        + sum(p.size * p.dtype.itemsize for p in params)
        + b_pad * n_out * 4
    )

    out = pl.pallas_call(
        _cartpole_mlp_kernel,
        out_shape=jax.ShapeDtypeStruct((b_pad, n_out), jnp.float32),
        grid=grid,
        in_specs=[
            pl.BlockSpec((tb, feat), lambda i: (i, 0)),        # x tile, pipelined
            pl.BlockSpec((feat, hidden), lambda i: (0, 0)),    # weights resident in VMEM
            pl.BlockSpec((1, hidden), lambda i: (0, 0)),
            pl.BlockSpec((hidden, n_out), lambda i: (0, 0)),
            pl.BlockSpec((1, n_out), lambda i: (0, 0)),
        ],
        out_specs=pl.BlockSpec((tb, n_out), lambda i: (i, 0)),  # only 2 real columns written
        compiler_params=pltpu.CompilerParams(
            dimension_semantics=("parallel",)),
        cost_estimate=pl.CostEstimate(
            flops=flops, transcendentals=0, bytes_accessed=bytes_accessed),
    )(x, w1_t, b1_r, w2_t, b2_r)

    return out if b_pad == B else out[:B]


def _init_params(key):
    """Deterministic synthetic params with PyTorch nn.Linear shapes
    (the original module loads them from baselines/var*.txt files).
    Uses uniform(-1/sqrt(fan_in), 1/sqrt(fan_in)) like PyTorch's default init.
    """
    k1, k2, k3, k4 = jax.random.split(key, 4)
    lim1 = 1.0 / jnp.sqrt(4.0)
    lim2 = 1.0 / jnp.sqrt(64.0)
    w1 = jax.random.uniform(k1, (64, 4), jnp.float32, -lim1, lim1)
    b1 = jax.random.uniform(k2, (64,), jnp.float32, -lim1, lim1)
    w2 = jax.random.uniform(k3, (2, 64), jnp.float32, -lim2, lim2)
    b2 = jax.random.uniform(k4, (2,), jnp.float32, -lim2, lim2)
    return w1, b1, w2, b2


# TODO(synk): QModel.g_v / batch_g_v rely on torch autograd over parameters; they are
# training-time utilities, not part of the forward pass, and are not implemented here.

if __name__ == "__main__":
    key = jax.random.PRNGKey(0)
    kx, kp = jax.random.split(key)
    batch = 8
    x = jax.random.normal(kx, (batch, 4), jnp.float32)   # cartpole state: 4 features
    w1, b1, w2, b2 = _init_params(kp)

    params = prepare_params(w1, b1, w2, b2)               # one-time layout/dtype prep
    out = cartpole_net_forward(x, params)
    out = jax.block_until_ready(out)

    # Loose check vs. plain-f32 reference (bf16 matmul inputs => ~0.4% relative error).
    ref_f32 = jnp.maximum(x @ w1.T + b1, 0.0) @ w2.T + b2
    assert out.shape == (batch, 2)
    assert jnp.allclose(out, ref_f32, atol=2e-2, rtol=2e-2)

    # Tighter check vs. a reference that replicates the bf16-in / f32-accumulate path.
    xb = x.astype(jnp.bfloat16)
    hb = jnp.maximum(
        jnp.dot(xb, w1.T.astype(jnp.bfloat16), preferred_element_type=jnp.float32) + b1, 0.0)
    ref_bf16 = jnp.dot(hb.astype(jnp.bfloat16), w2.T.astype(jnp.bfloat16),
                       preferred_element_type=jnp.float32) + b2
    assert jnp.allclose(out, ref_bf16, atol=1e-4, rtol=1e-4)

    print("KERNEL_OK")
</pallas_src>

<mosaic_0001>
module attributes {stable_mosaic.version = 11 : i64} {
  func.func @_cartpole_mlp_kernel(%arg0: i32, %arg1: memref<8x4xf32, #tpu.memory_space<vmem>>, %arg2: memref<4x64xbf16, #tpu.memory_space<vmem>>, %arg3: memref<1x64xf32, #tpu.memory_space<vmem>>, %arg4: memref<64x2xbf16, #tpu.memory_space<vmem>>, %arg5: memref<1x2xf32, #tpu.memory_space<vmem>>, %arg6: memref<8x2xf32, #tpu.memory_space<vmem>>) attributes {dimension_semantics = [#tpu.dimension_semantics<parallel>], iteration_bounds = array<i64: 1>, scalar_prefetch = 0 : i64, scratch_operands = 0 : i64, tpu.core_type = #tpu.core_type<tc>, window_params = [{transform_indices = @transform_0, window_bounds = array<i64: 8, 4>}, {pipeline_mode = #tpu.pipeline_mode<synchronous>, transform_indices = @transform_1, window_bounds = array<i64: 4, 64>}, {pipeline_mode = #tpu.pipeline_mode<synchronous>, transform_indices = @transform_2, window_bounds = array<i64: 1, 64>}, {pipeline_mode = #tpu.pipeline_mode<synchronous>, transform_indices = @transform_3, window_bounds = array<i64: 64, 2>}, {pipeline_mode = #tpu.pipeline_mode<synchronous>, transform_indices = @transform_4, window_bounds = array<i64: 1, 2>}, {transform_indices = @transform_5, window_bounds = array<i64: 8, 2>}]} {
    %c0 = arith.constant 0 : index
    %c0_0 = arith.constant 0 : index
    %0 = vector.load %arg1[%c0, %c0_0] : memref<8x4xf32, #tpu.memory_space<vmem>>, vector<8x4xf32>
    %1 = arith.truncf %0 : vector<8x4xf32> to vector<8x4xbf16>
    %c0_1 = arith.constant 0 : index
    %c0_2 = arith.constant 0 : index
    %2 = vector.load %arg2[%c0_1, %c0_2] : memref<4x64xbf16, #tpu.memory_space<vmem>>, vector<4x64xbf16>
    %cst = arith.constant dense<0.000000e+00> : vector<8x64xf32>
    %3 = tpu.matmul %1, %2, %cst {dimension_numbers = #tpu.dot_dimension_numbers<[1], [0], [0], [1], [0, 0, 1, 1], [], []>} : vector<8x4xbf16>, vector<4x64xbf16>, vector<8x64xf32> -> vector<8x64xf32>
    %c0_3 = arith.constant 0 : index
    %c0_4 = arith.constant 0 : index
    %4 = vector.load %arg3[%c0_3, %c0_4] : memref<1x64xf32, #tpu.memory_space<vmem>>, vector<1x64xf32>
    %5 = vector.broadcast %4 : vector<1x64xf32> to vector<8x64xf32>
    %6 = arith.addf %3, %5 : vector<8x64xf32>
    %cst_5 = arith.constant 0.000000e+00 : f32
    %7 = vector.broadcast %cst_5 : f32 to vector<8x64xf32>
    %8 = arith.maximumf %6, %7 : vector<8x64xf32>
    %9 = arith.truncf %8 : vector<8x64xf32> to vector<8x64xbf16>
    %c0_6 = arith.constant 0 : index
    %c0_7 = arith.constant 0 : index
    %10 = vector.load %arg4[%c0_6, %c0_7] : memref<64x2xbf16, #tpu.memory_space<vmem>>, vector<64x2xbf16>
    %cst_8 = arith.constant dense<0.000000e+00> : vector<8x2xf32>
    %11 = tpu.matmul %9, %10, %cst_8 {dimension_numbers = #tpu.dot_dimension_numbers<[1], [0], [0], [1], [0, 0, 1, 1], [], []>} : vector<8x64xbf16>, vector<64x2xbf16>, vector<8x2xf32> -> vector<8x2xf32>
    %c0_9 = arith.constant 0 : index
    %c0_10 = arith.constant 0 : index
    %12 = vector.load %arg5[%c0_9, %c0_10] : memref<1x2xf32, #tpu.memory_space<vmem>>, vector<1x2xf32>
    %13 = vector.broadcast %12 : vector<1x2xf32> to vector<8x2xf32>
    %14 = arith.addf %11, %13 : vector<8x2xf32>
    %c0_11 = arith.constant 0 : index
    %c0_12 = arith.constant 0 : index
    %15 = vector.load %arg6[%c0_11, %c0_12] : memref<8x2xf32, #tpu.memory_space<vmem>>, vector<8x2xf32>
    tpu.vector_store %arg6[%c0_11, %c0_12], %14 {strides = array<i32>} : memref<8x2xf32, #tpu.memory_space<vmem>>, vector<8x2xf32>,
    return
  }
  func.func @transform_0(%arg0: i32) -> (i32, i32) {
    %c0_i32 = arith.constant 0 : i32
    %c0_i32_0 = arith.constant 0 : i32
    return %arg0, %c0_i32 : i32, i32
  }
  func.func @transform_1(%arg0: i32) -> (i32, i32) {
    %c0_i32 = arith.constant 0 : i32
    %c0_i32_0 = arith.constant 0 : i32
    %c0_i32_1 = arith.constant 0 : i32
    return %c0_i32, %c0_i32_0 : i32, i32
  }
  func.func @transform_2(%arg0: i32) -> (i32, i32) {
    %c0_i32 = arith.constant 0 : i32
    %c0_i32_0 = arith.constant 0 : i32
    %c0_i32_1 = arith.constant 0 : i32
    return %c0_i32, %c0_i32_0 : i32, i32
  }
  func.func @transform_3(%arg0: i32) -> (i32, i32) {
    %c0_i32 = arith.constant 0 : i32
    %c0_i32_0 = arith.constant 0 : i32
    %c0_i32_1 = arith.constant 0 : i32
    return %c0_i32, %c0_i32_0 : i32, i32
  }
  func.func @transform_4(%arg0: i32) -> (i32, i32) {
    %c0_i32 = arith.constant 0 : i32
    %c0_i32_0 = arith.constant 0 : i32
    %c0_i32_1 = arith.constant 0 : i32
    return %c0_i32, %c0_i32_0 : i32, i32
  }
  func.func @transform_5(%arg0: i32) -> (i32, i32) {
    %c0_i32 = arith.constant 0 : i32
    %c0_i32_0 = arith.constant 0 : i32
    return %arg0, %c0_i32 : i32, i32
  }
}

</mosaic_0001>

<llo_original>
// kernel: tpu_custom_call.1
$region0: #{tpu_custom_call.1}
  #allocation0 [shape = 'u32[]', space=smem, size = 0x4, offset = 0x4, fixed_abs, tag = 'smem constant byte address 0x4 - core index']
  #allocation1 [shape = 'u32[144,128]{1,0:T(1,128)}', space=vmem, size = 0x12000, scoped, tag = 'internal scratch']
  %s0 = inlined_call_operand.vmem [shape: f32[8,4], index: 0, kind: input, shape index: {}]
  %s1 = inlined_call_operand.vmem [shape: bf16[4,64], index: 1, kind: input, shape index: {}]
  %s2 = inlined_call_operand.vmem [shape: f32[1,64], index: 2, kind: input, shape index: {}]
  %s3 = inlined_call_operand.vmem [shape: bf16[64,2], index: 3, kind: input, shape index: {}]
  %s4 = inlined_call_operand.vmem [shape: f32[1,2], index: 4, kind: input, shape index: {}]
  %s5 = inlined_call_operand.vmem [shape: f32[8,2], index: 5, kind: output, shape index: {}]
  %s6 = sld [smem:[#allocation0]]
  $region30: #{tpu_custom_call.1} parent=0
    _
  %s8 = ssub.s32 1, %s6
  %s9 = scalar_select 0, %s8, %s6
  // Predicated region
  $region2: #{tpu_custom_call.1} parent=0 // pred_check
    _
  $region3: #{tpu_custom_call.1} parent=0 // pred_check_branch
    %11 = sbr.rel (0) target = $region5
  $region4: #{tpu_custom_call.1} parent=0 // pred_region
    _
  $region5: #{tpu_custom_call.1} parent=0 // pred_fallthru
    _
  // Predicated region
  $region6: #{tpu_custom_call.1} parent=0 // pred_check
    _
  $region7: #{tpu_custom_call.1} parent=0 // pred_check_branch
    %13 = sbr.rel (0) target = $region9
  $region8: #{tpu_custom_call.1} parent=0 // pred_region
    _
  $region9: #{tpu_custom_call.1} parent=0 // pred_fallthru
    _
  // Predicated region
  $region10: #{tpu_custom_call.1} parent=0 // pred_check
    _
  $region11: #{tpu_custom_call.1} parent=0 // pred_check_branch
    %15 = sbr.rel (0) target = $region13
  $region12: #{tpu_custom_call.1} parent=0 // pred_region
    _
  $region13: #{tpu_custom_call.1} parent=0 // pred_fallthru
    _
  // Predicated region
  $region14: #{tpu_custom_call.1} parent=0 // pred_check
    _
  $region15: #{tpu_custom_call.1} parent=0 // pred_check_branch
    %17 = sbr.rel (0) target = $region17
  $region16: #{tpu_custom_call.1} parent=0 // pred_region
    _
  $region17: #{tpu_custom_call.1} parent=0 // pred_fallthru
    _
  // Predicated region
  $region18: #{tpu_custom_call.1} parent=0 // pred_check
    _
  $region19: #{tpu_custom_call.1} parent=0 // pred_check_branch
    %19 = sbr.rel (0) target = $region21
  $region20: #{tpu_custom_call.1} parent=0 // pred_region
    _
  $region21: #{tpu_custom_call.1} parent=0 // pred_fallthru
    _
  %v21 = vld [vmem:[%s0] sm:$0xff]
  %v22 = vpack.c.bf16 %v21, %v21
  %v23 = vld [vmem:[%s1] sm:$0x3]
  %v24 = vld [vmem:[%s2] sm:$0x1]
  %v26 = vlaneseq
  %v27 = vshrl.u32 %v26, 7
  %v28 = vsub.s32 0, %v27
  %v29 = vrot.slane %v24, %v28
  %vm31 = vcmask 31744
  %v33 = vsel %vm31, %v22, 0
  %vm35 = vcmask 1041408
  %v37 = vsel %vm35, %v23, 0
  %39 = vmatprep.subr.bf16.mxu0 0
  %40 = vmatpush1.bf16.msra.mxu0 0
  %41 = vmatprep.subr.bf16.mxu0 0
  %42 = vmatpush1.bf16.msra.mxu0 0
  %43 = vmatprep.subr.bf16.mxu0 0
  %44 = vmatpush1.bf16.msra.mxu0 0
  %45 = vmatprep.subr.bf16.mxu0 0
  %46 = vmatpush1.bf16.msra.mxu0 0
  %47 = vmatprep.subr.bf16.mxu0 0
  %48 = vmatpush1.bf16.msra.mxu0 0
  %49 = vmatprep.subr.bf16.mxu0 0
  %50 = vmatpush1.bf16.msra.mxu0 0
  %51 = vmatprep.subr.bf16.mxu0 0
  %52 = vmatpush1.bf16.msra.mxu0 0
  %53 = vmatprep.subr.bf16.mxu0 0
  %54 = vmatpush1.bf16.msra.mxu0 %v37
  %55 = vmatprep.subr.bf16.mxu0 0
  %56 = vmatpush2.bf16.msra.mxu0 0
  %57 = vmatprep.subr.bf16.mxu0 0
  %58 = vmatpush2.bf16.msra.mxu0 0
  %59 = vmatprep.subr.bf16.mxu0 0
  %60 = vmatpush2.bf16.msra.mxu0 0
  %61 = vmatprep.subr.bf16.mxu0 0
  %62 = vmatpush2.bf16.msra.mxu0 0
  %63 = vmatprep.subr.bf16.mxu0 0
  %64 = vmatpush2.bf16.msra.mxu0 0
  %65 = vmatprep.subr.bf16.mxu0 0
  %66 = vmatpush2.bf16.msra.mxu0 0
  %67 = vmatprep.subr.bf16.mxu0 0
  %68 = vmatpush2.bf16.msra.mxu0 0
  %69 = vmatprep.subr.bf16.mxu0 0
  %70 = vmatpush2.bf16.msra.mxu0 0
  %71 = vmatprep.mubr.bf16.mxu0 0
  %72 = vmatmul.mubr.bf16.gmra.mxu0 %v33
  %v73 = vpop.f32.mrf.mxu0
  %v74 = vadd.f32 %v29, %v73
  %v75 = vpop.f32.mrf.mxu0
  %v76 = vpop.f32.mrf.mxu0
  %v77 = vpop.f32.mrf.mxu0
  %78 = vdwg.mxu0
  %v79 = vmax.f32 %v74, 0.0
  %v80 = vpack.c.bf16 %v79, %v79
  %v81 = vld [vmem:[%s3] sm:$0xf]
  %v82 = vld [vmem:[%s3 + $0x4] sm:$0xf]
  %v83 = vld [vmem:[%s3 + $0x8] sm:$0xf]
  %v84 = vld [vmem:[%s3 + $0xc] sm:$0xf]
  %v85 = vld [vmem:[%s3 + $0x10] sm:$0xf]
  %v86 = vld [vmem:[%s3 + $0x14] sm:$0xf]
  %v87 = vld [vmem:[%s3 + $0x18] sm:$0xf]
  %v88 = vld [vmem:[%s3 + $0x1c] sm:$0xf]
  %v89 = vld [vmem:[%s4] sm:$0x1]
  %v91 = vlaneseq
  %v92 = vshrl.u32 %v91, 7
  %v93 = vsub.s32 0, %v92
  %v94 = vrot.slane %v89, %v93
  %v104 = vunpack.c.l.b16 %v81
  %v105 = vunpack.c.l.b16 %v82
  %v106 = vunpack.c.l.b16 %v83
  %v107 = vunpack.c.l.b16 %v84
  %v108 = vunpack.c.l.b16 %v85
  %v109 = vunpack.c.l.b16 %v86
  %v110 = vunpack.c.l.b16 %v87
  %v111 = vunpack.c.l.b16 %v88
  %v112 = vpack.c.b16 %v105, %v104
  %v113 = vpack.c.b16 %v107, %v106
  %v114 = vpack.c.b16 %v109, %v108
  %v115 = vpack.c.b16 %v111, %v110
  %vm120 = vcmask 523264
  %v122 = vsel %vm120, %v80, 0
  %124 = vmatprep.subr.bf16.mxu0 0
  %125 = vmatpush1.bf16.msra.mxu0 0
  %126 = vmatprep.subr.bf16.mxu0 0
  %127 = vmatpush1.bf16.msra.mxu0 0
  %128 = vmatprep.subr.bf16.mxu0 0
  %129 = vmatpush1.bf16.msra.mxu0 0
  %130 = vmatprep.subr.bf16.mxu0 0
  %131 = vmatpush1.bf16.msra.mxu0 0
  %132 = vmatprep.subr.bf16.mxu0 0
  %133 = vmatpush1.bf16.msra.mxu0 %v115
  %134 = vmatprep.subr.bf16.mxu0 0
  %135 = vmatpush1.bf16.msra.mxu0 %v114
  %136 = vmatprep.subr.bf16.mxu0 0
  %137 = vmatpush1.bf16.msra.mxu0 %v113
  %138 = vmatprep.subr.bf16.mxu0 0
  %139 = vmatpush1.bf16.msra.mxu0 %v112
  %140 = vmatprep.subr.bf16.mxu0 0
  %141 = vmatpush2.bf16.msra.mxu0 0
  %142 = vmatprep.subr.bf16.mxu0 0
  %143 = vmatpush2.bf16.msra.mxu0 0
  %144 = vmatprep.subr.bf16.mxu0 0
  %145 = vmatpush2.bf16.msra.mxu0 0
  %146 = vmatprep.subr.bf16.mxu0 0
  %147 = vmatpush2.bf16.msra.mxu0 0
  %148 = vmatprep.subr.bf16.mxu0 0
  %149 = vmatpush2.bf16.msra.mxu0 0
  %150 = vmatprep.subr.bf16.mxu0 0
  %151 = vmatpush2.bf16.msra.mxu0 0
  %152 = vmatprep.subr.bf16.mxu0 0
  %153 = vmatpush2.bf16.msra.mxu0 0
  %154 = vmatprep.subr.bf16.mxu0 0
  %155 = vmatpush2.bf16.msra.mxu0 0
  %156 = vmatprep.mubr.bf16.mxu0 0
  %157 = vmatmul.mubr.bf16.gmra.mxu0 %v122
  %v158 = vpop.f32.mrf.mxu0
  %v159 = vadd.f32 %v94, %v158
  %v160 = vpop.f32.mrf.mxu0
  %v161 = vpop.f32.mrf.mxu0
  %v162 = vpop.f32.mrf.mxu0
  %163 = vdwg.mxu0
  %vm164 = vcmask 15360
  %165 = vst.msk [vmem:[%s5] sm:$0xff] %vm164, %v159
  // Predicated region
  $region22: #{tpu_custom_call.1} parent=0 // pred_check
    _
  $region23: #{tpu_custom_call.1} parent=0 // pred_check_branch
    %167 = sbr.rel (0) target = $region25
  $region24: #{tpu_custom_call.1} parent=0 // pred_region
    _
  $region25: #{tpu_custom_call.1} parent=0 // pred_fallthru
    _
  // Predicated region
  $region26: #{tpu_custom_call.1} parent=0 // pred_check
    _
  $region27: #{tpu_custom_call.1} parent=0 // pred_check_branch
    %169 = sbr.rel (0) target = $region29
  $region28: #{tpu_custom_call.1} parent=0 // pred_region
    _
  $region29: #{tpu_custom_call.1} parent=0 // pred_fallthru
    _

</llo_original>
